<compile_context>
chip_gen: v7x
topology: tpu7x:2x2x1
jax: 0.10.0
libtpu: 0.0.40
codegen_flags: <defaults>
</compile_context>

<pallas_src>
import functools

import jax
import jax.numpy as jnp
from jax import lax
from jax.experimental import pallas as pl
from jax.experimental.pallas import tpu as pltpu


def _make_attn_kernel(emit_attention):
    """Build the attention-core kernel; `emit_attention` is a trace-time bool."""

    def kernel(gamma_ref, q_ref, kt_ref, v_ref, x_ref, *out_refs):
        # gamma_ref : SMEM (1,) f32 (scalar prefetch)
        # q_ref     : (1, TQ,  Cqp) bf16  query rows for this tile (padded channels)
        # kt_ref    : (1, Cqp, N)   bf16  all keys, pre-transposed (lane-dense over N)
        # v_ref     : (1, C,   N)   bf16  all values, channels-first
        # x_ref     : (1, C,   TQ)  f32   residual slice, channels-first
        # out_refs[0]: (1, C, TQ)         out^T tile (channels-first, lane-dense)
        # out_refs[1]: (1, TQ, N) bf16    attention rows (only if emit_attention)
        q = q_ref[0]                       # (TQ, Cqp) bf16
        kt = kt_ref[0]                     # (Cqp, N)  bf16

        # energy[i, j] = q_i . k_j  -- standard (M,K)x(K,N) MXU feed, f32 acc.
        energy = jnp.dot(q, kt, preferred_element_type=jnp.float32)   # (TQ, N)

        # Row softmax in f32; reciprocal on the EUP slot.  approx=True means
        # rows sum to 1 only to ~1e-3 relative -- fine for the forward pass,
        # flag if `attention` feeds a loss / hand-written backward.
        m = jnp.max(energy, axis=-1, keepdims=True)
        e = jnp.exp(energy - m)
        p = e * pl.reciprocal(jnp.sum(e, axis=-1, keepdims=True), approx=True)
        # TODO(synk): on v6e/v7x the exp + scale could run in bf16 (EUP bf16 is
        # ~2x) once the attn writeback is no longer the roofline limiter.

        p_bf16 = p.astype(jnp.bfloat16)

        # out^T[c, i] = sum_j v[c, j] * attn[i, j] : contract the shared N axis
        # (flash-attention-style trans_b feed), bf16 operands, f32 accumulate.
        out_t = lax.dot_general(
            v_ref[0], p_bf16,
            dimension_numbers=(((1,), (1,)), ((), ())),
            preferred_element_type=jnp.float32)                       # (C, TQ)

        gamma = gamma_ref[0]
        out_refs[0][0] = (gamma * out_t
                          + x_ref[0].astype(jnp.float32)).astype(out_refs[0].dtype)
        if emit_attention:
            out_refs[1][0] = p_bf16.astype(out_refs[1].dtype)

    return kernel


def _pick_tq(n):
    """Largest query tile that divides N, multiple of 8, capped at 128.

    128 fills the v5e MXU M-dim and keeps the (TQ, N) f32 softmax temporaries
    plus the bf16 attn output double-buffers comfortably inside every
    generation's scoped VMEM (v6e/v7x users can pass tq=256 explicitly)."""
    for cand in (128, 64, 32, 16, 8):
        if cand <= n and n % cand == 0:
            return cand
    return n


def _vmem_limit_bytes():
    cap = 64 << 20
    try:
        cap = int(getattr(pltpu.get_tpu_info(), "vmem_capacity_bytes", cap)) or cap
    except Exception:
        pass
    return int(cap * 3 // 4)     # ~96 MiB on v5e/v6e, ~48 MiB on v7x


@functools.partial(jax.jit, static_argnames=("tq", "return_attention"))
def self_attn_forward(x_nchw, wq, bq, wk, bk, wv, bv, gamma, *,
                      tq=None, return_attention=True):
    """x_nchw: (B, C, W, H) f32; wq/wk: (C, C//8); wv: (C, C); gamma: (1,).

    Returns (out (B, C, W, H), attention (B, N, N) bf16 or None)."""
    B, C, W, H = x_nchw.shape
    N = W * H
    Cq = wq.shape[1]
    Cqp = max(128, ((Cq + 127) // 128) * 128)   # pad Q/K channels to 128 lanes

    if tq is None:
        tq = _pick_tq(N)
    assert N % tq == 0, "query tile must divide N = W*H"
    n_q_tiles = N // tq

    x_cn = x_nchw.reshape(B, C, N)              # free view of NCHW

    # ---- Hoisted QKV projection (plain XLA; tiny next to the O(N^2) core).
    # Zero-padded Q/K weight columns keep the padded channels exactly zero, so
    # they contribute nothing to the energy matmul.
    wq_pad = jnp.zeros((C, Cqp), jnp.float32).at[:, :Cq].set(wq.astype(jnp.float32))
    bq_pad = jnp.zeros((Cqp,), jnp.float32).at[:Cq].set(bq.astype(jnp.float32))
    wk_pad = jnp.zeros((C, Cqp), jnp.float32).at[:, :Cq].set(wk.astype(jnp.float32))
    bk_pad = jnp.zeros((Cqp,), jnp.float32).at[:Cq].set(bk.astype(jnp.float32))

    q_bnd = (jnp.einsum("bcn,cd->bnd", x_cn, wq_pad) + bq_pad
             ).astype(jnp.bfloat16)                               # (B, N, Cqp)
    kt_bdn = (jnp.einsum("bcn,cd->bdn", x_cn, wk_pad) + bk_pad[:, None]
              ).astype(jnp.bfloat16)                              # (B, Cqp, N)
    v_bcn = (jnp.einsum("bcn,ce->ben", x_cn, wv.astype(jnp.float32))
             + bv.astype(jnp.float32)[:, None]
             ).astype(jnp.bfloat16)                               # (B, C, N)
    gamma_s = gamma.reshape(1).astype(jnp.float32)

    out_sds = jax.ShapeDtypeStruct((B, C, N), x_nchw.dtype)
    out_spec = pl.BlockSpec((1, C, tq), lambda b, qi, g: (b, 0, qi))
    if return_attention:
        out_shape = (out_sds, jax.ShapeDtypeStruct((B, N, N), jnp.bfloat16))
        out_specs = [out_spec,
                     pl.BlockSpec((1, tq, N), lambda b, qi, g: (b, qi, 0))]
    else:
        out_shape = (out_sds,)
        out_specs = [out_spec]

    results = pl.pallas_call(
        _make_attn_kernel(return_attention),
        out_shape=out_shape,
        grid_spec=pltpu.PrefetchScalarGridSpec(
            num_scalar_prefetch=1,                # gamma -> SMEM
            grid=(B, n_q_tiles),
            in_specs=[
                pl.BlockSpec((1, tq, Cqp), lambda b, qi, g: (b, qi, 0)),  # Q tile
                pl.BlockSpec((1, Cqp, N), lambda b, qi, g: (b, 0, 0)),    # K^T (all keys)
                pl.BlockSpec((1, C, N), lambda b, qi, g: (b, 0, 0)),      # V (all values)
                pl.BlockSpec((1, C, tq), lambda b, qi, g: (b, 0, qi)),    # x residual slice
            ],
            out_specs=out_specs,
        ),
        compiler_params=pltpu.CompilerParams(
            # No cross-tile state => both axes shard across v7x's two TCs.
            dimension_semantics=("parallel", "parallel"),
            vmem_limit_bytes=_vmem_limit_bytes()),
    )(gamma_s, q_bnd, kt_bdn, v_bcn, x_cn)

    out_cn = results[0]
    attn = results[1] if return_attention else None
    return out_cn.reshape(B, C, W, H), attn


def _reference(x_nchw, wq, bq, wk, bk, wv, bv, gamma):
    """Pure-JAX f32 reference mirroring the PyTorch module."""
    B, C, W, H = x_nchw.shape
    N = W * H
    x = x_nchw.reshape(B, C, N)
    q = jnp.einsum("bcn,cd->bnd", x, wq) + bq                 # proj_query (B,N,Cq)
    k = jnp.einsum("bcn,cd->bdn", x, wk) + bk[:, None]        # proj_key   (B,Cq,N)
    energy = jnp.einsum("bnd,bdm->bnm", q, k)                 # (B,N,N)
    attn = jax.nn.softmax(energy, axis=-1)
    v = jnp.einsum("bcn,ce->ben", x, wv) + bv[:, None]        # proj_value (B,C,N)
    out = jnp.einsum("bcn,bmn->bcm", v, attn)                 # (B,C,N)
    out = gamma.reshape(()) * out + x
    return out.reshape(B, C, W, H), attn


if __name__ == "__main__":
    # Small shapes consistent with the module: in_dim divisible by 8 so the
    # query/key 1x1 convs (out_channels = in_dim // 8) are well defined.
    B, C, W, H = 2, 32, 16, 16       # N = W*H = 256, Cq = C // 8 = 4
    Cq = C // 8

    key = jax.random.PRNGKey(0)
    kx, kq, kk, kv, kbq, kbk, kbv = jax.random.split(key, 7)

    x = jax.random.normal(kx, (B, C, W, H), dtype=jnp.float32)

    # Conv2d 1x1 weights stored as (C_in, C_out).
    scale = 1.0 / jnp.sqrt(jnp.float32(C))
    wq = jax.random.normal(kq, (C, Cq), dtype=jnp.float32) * scale
    wk = jax.random.normal(kk, (C, Cq), dtype=jnp.float32) * scale
    wv = jax.random.normal(kv, (C, C), dtype=jnp.float32) * scale
    bq = jax.random.normal(kbq, (Cq,), dtype=jnp.float32) * 0.1
    bk = jax.random.normal(kbk, (Cq,), dtype=jnp.float32) * 0.1
    bv = jax.random.normal(kbv, (C,), dtype=jnp.float32) * 0.1
    # nn.Parameter(torch.zeros(1)) -> gamma = 0; use a nonzero value so the
    # attention path actually affects `out` in the check.
    gamma = jnp.array([0.5], dtype=jnp.float32)

    # Full path (returns attention, matching the module's (out, attention)).
    out, attn = self_attn_forward(x, wq, bq, wk, bk, wv, bv, gamma)
    jax.block_until_ready((out, attn))

    out_ref, attn_ref = _reference(x, wq, bq, wk, bk, wv, bv, gamma)
    assert out.shape == (B, C, W, H) and attn.shape == (B, W * H, W * H)
    # bf16 MXU operands + bf16 attn writeback + approx reciprocal -> looser tol.
    assert jnp.allclose(attn, attn_ref, atol=1e-2, rtol=5e-2), \
        float(jnp.max(jnp.abs(attn.astype(jnp.float32) - attn_ref)))
    assert jnp.allclose(out, out_ref, atol=5e-2, rtol=5e-2), \
        float(jnp.max(jnp.abs(out - out_ref)))

    # Fast path that skips the O(N^2) attention writeback entirely.
    out2, attn2 = self_attn_forward(x, wq, bq, wk, bk, wv, bv, gamma,
                                    return_attention=False)
    jax.block_until_ready(out2)
    assert attn2 is None
    assert jnp.allclose(out2, out_ref, atol=5e-2, rtol=5e-2), \
        float(jnp.max(jnp.abs(out2 - out_ref)))

    print("KERNEL_OK")
</pallas_src>

<mosaic_0001>
module attributes {stable_mosaic.version = 11 : i64} {
  func.func @kernel(%arg0: i32, %arg1: i32, %arg2: memref<1xf32, #tpu.memory_space<smem>>, %arg3: memref<1x128x128xbf16, #tpu.memory_space<vmem>>, %arg4: memref<1x128x256xbf16, #tpu.memory_space<vmem>>, %arg5: memref<1x32x256xbf16, #tpu.memory_space<vmem>>, %arg6: memref<1x32x128xf32, #tpu.memory_space<vmem>>, %arg7: memref<1x32x128xf32, #tpu.memory_space<vmem>>, %arg8: memref<1x128x256xbf16, #tpu.memory_space<vmem>>) attributes {dimension_semantics = [#tpu.dimension_semantics<parallel>, #tpu.dimension_semantics<parallel>], iteration_bounds = array<i64: 2, 2>, scalar_prefetch = 1 : i64, scratch_operands = 0 : i64, tpu.core_type = #tpu.core_type<tc>, window_params = [{transform_indices = @transform_0, window_bounds = array<i64: 1, 128, 128>}, {transform_indices = @transform_1, window_bounds = array<i64: 1, 128, 256>}, {transform_indices = @transform_2, window_bounds = array<i64: 1, 32, 256>}, {transform_indices = @transform_3, window_bounds = array<i64: 1, 32, 128>}, {transform_indices = @transform_4, window_bounds = array<i64: 1, 32, 128>}, {transform_indices = @transform_5, window_bounds = array<i64: 1, 128, 256>}]} {
    %c0 = arith.constant 0 : index
    %c0_0 = arith.constant 0 : index
    %c0_1 = arith.constant 0 : index
    %0 = vector.load %arg3[%c0, %c0_0, %c0_1] : memref<1x128x128xbf16, #tpu.memory_space<vmem>>, vector<1x128x128xbf16>
    %1 = vector.shape_cast %0 : vector<1x128x128xbf16> to vector<128x128xbf16>
    %c0_2 = arith.constant 0 : index
    %c0_3 = arith.constant 0 : index
    %c0_4 = arith.constant 0 : index
    %2 = vector.load %arg4[%c0_2, %c0_3, %c0_4] : memref<1x128x256xbf16, #tpu.memory_space<vmem>>, vector<1x128x256xbf16>
    %3 = vector.shape_cast %2 : vector<1x128x256xbf16> to vector<128x256xbf16>
    %cst = arith.constant dense<0.000000e+00> : vector<128x256xf32>
    %4 = tpu.matmul %1, %3, %cst {dimension_numbers = #tpu.dot_dimension_numbers<[1], [0], [0], [1], [0, 0, 1, 1], [], []>} : vector<128x128xbf16>, vector<128x256xbf16>, vector<128x256xf32> -> vector<128x256xf32>
    %cst_5 = arith.constant dense<0xFF800000> : vector<128xf32>
    %5 = vector.multi_reduction <maximumf>, %4, %cst_5 [1] : vector<128x256xf32> to vector<128xf32>
    %6 = vector.shape_cast %5 : vector<128xf32> to vector<128x1xf32>
    %7 = vector.broadcast %6 : vector<128x1xf32> to vector<128x256xf32>
    %8 = arith.subf %4, %7 : vector<128x256xf32>
    %9 = math.exp %8 : vector<128x256xf32>
    %cst_6 = arith.constant dense<0.000000e+00> : vector<128xf32>
    %10 = vector.multi_reduction <add>, %9, %cst_6 [1] : vector<128x256xf32> to vector<128xf32>
    %11 = vector.shape_cast %10 : vector<128xf32> to vector<128x1xf32>
    %12 = tpu.reciprocal %11 {approx = true} : vector<128x1xf32> -> vector<128x1xf32>
    %13 = vector.broadcast %12 : vector<128x1xf32> to vector<128x256xf32>
    %14 = arith.mulf %9, %13 : vector<128x256xf32>
    %15 = arith.truncf %14 : vector<128x256xf32> to vector<128x256xbf16>
    %c0_7 = arith.constant 0 : index
    %c0_8 = arith.constant 0 : index
    %c0_9 = arith.constant 0 : index
    %16 = vector.load %arg5[%c0_7, %c0_8, %c0_9] : memref<1x32x256xbf16, #tpu.memory_space<vmem>>, vector<1x32x256xbf16>
    %17 = vector.shape_cast %16 : vector<1x32x256xbf16> to vector<32x256xbf16>
    %cst_10 = arith.constant dense<0.000000e+00> : vector<32x128xf32>
    %18 = tpu.matmul %17, %15, %cst_10 {dimension_numbers = #tpu.dot_dimension_numbers<[1], [1], [0], [0], [0, 0, 1, 0], [], []>} : vector<32x256xbf16>, vector<128x256xbf16>, vector<32x128xf32> -> vector<32x128xf32>
    %c0_11 = arith.constant 0 : index
    %19 = memref.load %arg2[%c0_11] : memref<1xf32, #tpu.memory_space<smem>>
    %20 = vector.broadcast %19 : f32 to vector<32x128xf32>
    %21 = arith.mulf %20, %18 : vector<32x128xf32>
    %c0_12 = arith.constant 0 : index
    %c0_13 = arith.constant 0 : index
    %c0_14 = arith.constant 0 : index
    %22 = vector.load %arg6[%c0_12, %c0_13, %c0_14] : memref<1x32x128xf32, #tpu.memory_space<vmem>>, vector<1x32x128xf32>
    %23 = vector.shape_cast %22 : vector<1x32x128xf32> to vector<32x128xf32>
    %24 = arith.addf %21, %23 : vector<32x128xf32>
    %c0_15 = arith.constant 0 : index
    %c0_16 = arith.constant 0 : index
    %c0_17 = arith.constant 0 : index
    %25 = vector.load %arg7[%c0_15, %c0_16, %c0_17] : memref<1x32x128xf32, #tpu.memory_space<vmem>>, vector<1x32x128xf32>
    %26 = vector.shape_cast %25 : vector<1x32x128xf32> to vector<32x128xf32>
    %27 = vector.shape_cast %24 : vector<32x128xf32> to vector<1x32x128xf32>
    tpu.vector_store %arg7[%c0_15, %c0_16, %c0_17], %27 {strides = array<i32>} : memref<1x32x128xf32, #tpu.memory_space<vmem>>, vector<1x32x128xf32>,
    %c0_18 = arith.constant 0 : index
    %c0_19 = arith.constant 0 : index
    %c0_20 = arith.constant 0 : index
    %28 = vector.load %arg8[%c0_18, %c0_19, %c0_20] : memref<1x128x256xbf16, #tpu.memory_space<vmem>>, vector<1x128x256xbf16>
    %29 = vector.shape_cast %28 : vector<1x128x256xbf16> to vector<128x256xbf16>
    %30 = vector.shape_cast %15 : vector<128x256xbf16> to vector<1x128x256xbf16>
    tpu.vector_store %arg8[%c0_18, %c0_19, %c0_20], %30 {strides = array<i32>} : memref<1x128x256xbf16, #tpu.memory_space<vmem>>, vector<1x128x256xbf16>,
    return
  }
  func.func @transform_0(%arg0: i32, %arg1: i32, %arg2: memref<1xf32, #tpu.memory_space<smem>>) -> (i32, i32, i32) {
    %c0_i32 = arith.constant 0 : i32
    %c0_i32_0 = arith.constant 0 : i32
    return %arg0, %arg1, %c0_i32 : i32, i32, i32
  }
  func.func @transform_1(%arg0: i32, %arg1: i32, %arg2: memref<1xf32, #tpu.memory_space<smem>>) -> (i32, i32, i32) {
    %c0_i32 = arith.constant 0 : i32
    %c0_i32_0 = arith.constant 0 : i32
    %c0_i32_1 = arith.constant 0 : i32
    return %arg0, %c0_i32, %c0_i32_0 : i32, i32, i32
  }
  func.func @transform_2(%arg0: i32, %arg1: i32, %arg2: memref<1xf32, #tpu.memory_space<smem>>) -> (i32, i32, i32) {
    %c0_i32 = arith.constant 0 : i32
    %c0_i32_0 = arith.constant 0 : i32
    %c0_i32_1 = arith.constant 0 : i32
    return %arg0, %c0_i32, %c0_i32_0 : i32, i32, i32
  }
  func.func @transform_3(%arg0: i32, %arg1: i32, %arg2: memref<1xf32, #tpu.memory_space<smem>>) -> (i32, i32, i32) {
    %c0_i32 = arith.constant 0 : i32
    %c0_i32_0 = arith.constant 0 : i32
    return %arg0, %c0_i32, %arg1 : i32, i32, i32
  }
  func.func @transform_4(%arg0: i32, %arg1: i32, %arg2: memref<1xf32, #tpu.memory_space<smem>>) -> (i32, i32, i32) {
    %c0_i32 = arith.constant 0 : i32
    %c0_i32_0 = arith.constant 0 : i32
    return %arg0, %c0_i32, %arg1 : i32, i32, i32
  }
  func.func @transform_5(%arg0: i32, %arg1: i32, %arg2: memref<1xf32, #tpu.memory_space<smem>>) -> (i32, i32, i32) {
    %c0_i32 = arith.constant 0 : i32
    %c0_i32_0 = arith.constant 0 : i32
    return %arg0, %arg1, %c0_i32 : i32, i32, i32
  }
}

</mosaic_0001>

<llo_original>
// kernel: self_attn_forward.1
$region0: #{self_attn_forward.1}
  #allocation0 [shape = 'u32[]', space=smem, size = 0x4, offset = 0x4, fixed_abs, tag = 'smem constant byte address 0x4 - core index']
  #allocation1 [shape = 'u32[144,128]{1,0:T(1,128)}', space=vmem, size = 0x12000, scoped, tag = 'internal scratch']
  #allocation2 [shape = 's32[1]{0}', space=sflag, size = 0x4, scoped, tag = 'scoped memory for self_attn_forward.1']
  #allocation3 [shape = 'f32[1]{0:T(128)S(6)}', space=smem, size = 0x200, scoped, tag = 'prefetched SMEM operand 0']
  %s0 = inlined_call_operand.<no memory space> [shape: f32[1], index: 0, kind: input, shape index: {}]
  %s1 = inlined_call_operand.vmem [shape: bf16[2,256,128], index: 1, kind: input, shape index: {}]
  %s2 = inlined_call_operand.vmem [shape: bf16[2,128,256], index: 2, kind: input, shape index: {}]
  %s3 = inlined_call_operand.vmem [shape: bf16[2,32,256], index: 3, kind: input, shape index: {}]
  %s4 = inlined_call_operand.vmem [shape: f32[2,32,256], index: 4, kind: input, shape index: {}]
  %s5 = inlined_call_operand.vmem [shape: f32[2,32,256], index: 5, kind: output, shape index: {0}]
  %s6 = inlined_call_operand.hbm [shape: bf16[2,256,256], index: 6, kind: output, shape index: {1}]
  %7 = xla_tuple %s5, %s6
  %s8 = sld [smem:[#allocation0]]
  $region129: #{self_attn_forward.1} parent=0
    _
  %s10 = ssub.s32 1, %s8
  %s11 = scalar_select 0, %s10, %s8
  %12 = sst [smem:[#allocation3]] %s0
  $region1: #{self_attn_forward.1} parent=0
    #allocation4 [shape = 'u8[32768]{0}', space=vmem, size = 0x8000, scoped, tag = 'input window, operand 4']
    #allocation5 [shape = 'u8[32768]{0}', space=vmem, size = 0x8000, scoped, tag = 'output window, operand 0']
    #allocation6 [shape = 'u8[131072]{0}', space=vmem, size = 0x20000, scoped, tag = 'output window, operand 1']
    #allocation7 [shape = 's32[2]{0}', space=sflag, size = 0x8, scoped, tag = 'scoped memory for self_attn_forward.1']
    %13 = vsyncpa [#allocation7], 0
    %s14 = scalar_lea.sflag [#allocation7], 1
    %15 = vsyncpa %s14, 0
    loop: start=0, step=1, limit=6
    $region2: #{self_attn_forward.1} parent=1 // loop_pre_header
      _
    $region3: #{self_attn_forward.1} parent=1 // loop_header
      %s17 = sphi 0, %s21
      %p18 = scmp.ge.s32.totalorder %s17, 6
      %s24 = sphi 0, %s36
      %s25 = sphi 0, %s32
      %s26 = sphi 0, %s24
      %s27 = sphi 0, %s25
      %s28 = sphi 0, %s26
      %s29 = sphi 0, %s27
      %s41 = sphi 0, %s43
      %s44 = sphi 0, %s41
      %s45 = sphi 0, %s44
      %s61 = sphi 0, %s45
      %s67 = sphi 0, %s69
      %s70 = sphi 0, %s67
      %s71 = sphi 0, %s70
      %s87 = sphi 0, %s71
      %s93 = sphi 0, %s95
      %s96 = sphi 0, %s93
      %s97 = sphi 0, %s96
      %s113 = sphi 0, %s97
      %s121 = sphi 0, %s123
      %s124 = sphi 0, %s121
      %s125 = sphi 0, %s124
      %s141 = sphi 0, %s125
      %s149 = sphi 0, %s151
      %s152 = sphi 0, %s149
      %s153 = sphi 0, %s152
      %s169 = sphi 0, %s153
      %s177 = sphi 0, %s179
      %s180 = sphi 0, %s177
      %s181 = sphi 0, %s180
      %s197 = sphi 0, %s181
    $region4: #{self_attn_forward.1} parent=1 // loop_header_branch
      %20 = sbr.rel (%p18) target = $region8
    $region5: #{self_attn_forward.1} parent=1 // loop_body
      %s22 = ssub.s32 %s17, 1
      %s23 = ssub.s32 %s17, 2
      %s30 = sadd.s32 1, %s25
      %p31 = scmp.ge.s32.totalorder %s30, 2
      %s32 = scalar_select %p31, 0, %s30
      %s33 = sadd.s32 1, %s24
      %s34 = scalar_select %p31, %s33, %s24
      %p35 = scmp.ge.s32.totalorder %s34, 2
      %s36 = scalar_select %p35, 0, %s34
      %s37 = ssub.s32 %s24, %s36
      %s38 = ssub.s32 %s25, %s32
      %s39 = sor.u32 %s37, %s38
      %p40 = scmp.eq.s32.totalorder %s39, 0
      %s42 = sadd.s32 %s41, 1
      %s43 = scalar_select %p40, %s41, %s42
      %p46 = pneg %p40
      %p47 = scmp.eq.s32.totalorder %s17, 3
      %p48 = por %p46, %p47
      %p49 = scmp.ne.s32.totalorder %s41, %s44
      %p50 = scmp.eq.s32.totalorder %s17, 0
      %p51 = por %p49, %p50
      %p52 = scmp.ne.s32.totalorder %s41, %s44
      %p53 = scmp.eq.s32.totalorder %s22, 3
      %p54 = por %p52, %p53
      %p55 = scmp.ne.s32.totalorder %s44, %s45
      %p56 = scmp.eq.s32.totalorder %s22, 0
      %p57 = por %p55, %p56
      %p58 = scmp.ne.s32.totalorder %s44, %s45
      %p59 = scmp.eq.s32.totalorder %s23, 3
      %p60 = por %p58, %p59
      %p62 = scmp.ne.s32.totalorder %s45, %s61
      %p63 = scmp.eq.s32.totalorder %s23, 0
      %p64 = por %p62, %p63
      %s65 = ssub.s32 %s24, %s36
      %p66 = scmp.eq.s32.totalorder %s65, 0
      %s68 = sadd.s32 %s67, 1
      %s69 = scalar_select %p66, %s67, %s68
      %p72 = pneg %p66
      %p73 = scmp.eq.s32.totalorder %s17, 3
      %p74 = por %p72, %p73
      %p75 = scmp.ne.s32.totalorder %s67, %s70
      %p76 = scmp.eq.s32.totalorder %s17, 0
      %p77 = por %p75, %p76
      %p78 = scmp.ne.s32.totalorder %s67, %s70
      %p79 = scmp.eq.s32.totalorder %s22, 3
      %p80 = por %p78, %p79
      %p81 = scmp.ne.s32.totalorder %s70, %s71
      %p82 = scmp.eq.s32.totalorder %s22, 0
      %p83 = por %p81, %p82
      %p84 = scmp.ne.s32.totalorder %s70, %s71
      %p85 = scmp.eq.s32.totalorder %s23, 3
      %p86 = por %p84, %p85
      %p88 = scmp.ne.s32.totalorder %s71, %s87
      %p89 = scmp.eq.s32.totalorder %s23, 0
      %p90 = por %p88, %p89
      %s91 = ssub.s32 %s24, %s36
      %p92 = scmp.eq.s32.totalorder %s91, 0
      %s94 = sadd.s32 %s93, 1
      %s95 = scalar_select %p92, %s93, %s94
      %p98 = pneg %p92
      %p99 = scmp.eq.s32.totalorder %s17, 3
      %p100 = por %p98, %p99
      %p101 = scmp.ne.s32.totalorder %s93, %s96
      %p102 = scmp.eq.s32.totalorder %s17, 0
      %p103 = por %p101, %p102
      %p104 = scmp.ne.s32.totalorder %s93, %s96
      %p105 = scmp.eq.s32.totalorder %s22, 3
      %p106 = por %p104, %p105
      %p107 = scmp.ne.s32.totalorder %s96, %s97
      %p108 = scmp.eq.s32.totalorder %s22, 0
      %p109 = por %p107, %p108
      %p110 = scmp.ne.s32.totalorder %s96, %s97
      %p111 = scmp.eq.s32.totalorder %s23, 3
      %p112 = por %p110, %p111
      %p114 = scmp.ne.s32.totalorder %s97, %s113
      %p115 = scmp.eq.s32.totalorder %s23, 0
      %p116 = por %p114, %p115
      %s117 = ssub.s32 %s24, %s36
      %s118 = ssub.s32 %s25, %s32
      %s119 = sor.u32 %s117, %s118
      %p120 = scmp.eq.s32.totalorder %s119, 0
      %s122 = sadd.s32 %s121, 1
      %s123 = scalar_select %p120, %s121, %s122
      %p126 = pneg %p120
      %p127 = scmp.eq.s32.totalorder %s17, 3
      %p128 = por %p126, %p127
      %p129 = scmp.ne.s32.totalorder %s121, %s124
      %p130 = scmp.eq.s32.totalorder %s17, 0
      %p131 = por %p129, %p130
      %p132 = scmp.ne.s32.totalorder %s121, %s124
      %p133 = scmp.eq.s32.totalorder %s22, 3
      %p134 = por %p132, %p133
      %p135 = scmp.ne.s32.totalorder %s124, %s125
      %p136 = scmp.eq.s32.totalorder %s22, 0
      %p137 = por %p135, %p136
      %p138 = scmp.ne.s32.totalorder %s124, %s125
      %p139 = scmp.eq.s32.totalorder %s23, 3
      %p140 = por %p138, %p139
      %p142 = scmp.ne.s32.totalorder %s125, %s141
      %p143 = scmp.eq.s32.totalorder %s23, 0
      %p144 = por %p142, %p143
      %s145 = ssub.s32 %s24, %s36
      %s146 = ssub.s32 %s25, %s32
      %s147 = sor.u32 %s145, %s146
      %p148 = scmp.eq.s32.totalorder %s147, 0
      %s150 = sadd.s32 %s149, 1
      %s151 = scalar_select %p148, %s149, %s150
      %p154 = pneg %p148
      %p155 = scmp.eq.s32.totalorder %s17, 3
      %p156 = por %p154, %p155
      %p157 = scmp.ne.s32.totalorder %s149, %s152
      %p158 = scmp.eq.s32.totalorder %s17, 0
      %p159 = por %p157, %p158
      %p160 = scmp.ne.s32.totalorder %s149, %s152
      %p161 = scmp.eq.s32.totalorder %s22, 3
      %p162 = por %p160, %p161
      %p163 = scmp.ne.s32.totalorder %s152, %s153
      %p164 = scmp.eq.s32.totalorder %s22, 0
      %p165 = por %p163, %p164
      %p166 = scmp.ne.s32.totalorder %s152, %s153
      %p167 = scmp.eq.s32.totalorder %s23, 3
      %p168 = por %p166, %p167
      %p170 = scmp.ne.s32.totalorder %s153, %s169
      %p171 = scmp.eq.s32.totalorder %s23, 0
      %p172 = por %p170, %p171
      %s173 = ssub.s32 %s24, %s36
      %s174 = ssub.s32 %s25, %s32
      %s175 = sor.u32 %s173, %s174
      %p176 = scmp.eq.s32.totalorder %s175, 0
      %s178 = sadd.s32 %s177, 1
      %s179 = scalar_select %p176, %s177, %s178
      %p182 = pneg %p176
      %p183 = scmp.eq.s32.totalorder %s17, 3
      %p184 = por %p182, %p183
      %p185 = scmp.ne.s32.totalorder %s177, %s180
      %p186 = scmp.eq.s32.totalorder %s17, 0
      %p187 = por %p185, %p186
      %p188 = scmp.ne.s32.totalorder %s177, %s180
      %p189 = scmp.eq.s32.totalorder %s22, 3
      %p190 = por %p188, %p189
      %p191 = scmp.ne.s32.totalorder %s180, %s181
      %p192 = scmp.eq.s32.totalorder %s22, 0
      %p193 = por %p191, %p192
      %p194 = scmp.ne.s32.totalorder %s180, %s181
      %p195 = scmp.eq.s32.totalorder %s23, 3
      %p196 = por %p194, %p195
      %p198 = scmp.ne.s32.totalorder %s181, %s197
      %p199 = scmp.eq.s32.totalorder %s23, 0
      %p200 = por %p198, %p199
      %p201 = scmp.le.s32.totalorder 1, %s17
      %p202 = scmp.lt.s32.totalorder %s17, 5
      %p203 = pnand %p201, %p202
      %p204 = pneg %p203
      // Predicated region
      $region9: #{self_attn_forward.1} parent=5 // pred_check
        _
      $region10: #{self_attn_forward.1} parent=5 // pred_check_branch
        %206 = sbr.rel (%p203) target = $region12
      $region11: #{self_attn_forward.1} parent=5 // pred_region
        %s207 = ssub.s32 %s17, 1
      $region12: #{self_attn_forward.1} parent=5 // pred_fallthru
        _
      %p208 = scmp.lt.s32.totalorder %s17, 4
      // Predicated region
      $region13: #{self_attn_forward.1} parent=5 // pred_check
        %p209 = pneg %p208
      $region14: #{self_attn_forward.1} parent=5 // pred_check_branch
        %211 = sbr.rel (%p209) target = $region16
      $region15: #{self_attn_forward.1} parent=5 // pred_region
        // Predicated region
        $region17: #{self_attn_forward.1} parent=15 // pred_check
          %p212 = pneg %p51
        $region18: #{self_attn_forward.1} parent=15 // pred_check_branch
          %214 = sbr.rel (%p212) target = $region20
        $region19: #{self_attn_forward.1} parent=15 // pred_region
          %s215 = smul.u32 16, %s25
          %p216 = scmp.lt.s32.totalorder %s24, 1
          %s217 = scalar_select %p216, %s24, 1
          %p218 = scmp.lt.s32.totalorder %s215, 31
          %s219 = scalar_select %p218, %s215, 31
          %s220 = smul.addr %s217, 32
          %s221 = sadd.s32 %s219, %s220
          %s222 = smul.addr %s221, 4
          %s223 = scalar_lea.vmem %s1, %s222
          %s224 = smul.u32 16, %s25
        $region20: #{self_attn_forward.1} parent=15 // pred_fallthru
          _
        // Predicated region
        $region21: #{self_attn_forward.1} parent=15 // pred_check
          %p225 = pneg %p77
        $region22: #{self_attn_forward.1} parent=15 // pred_check_branch
          %227 = sbr.rel (%p225) target = $region24
        $region23: #{self_attn_forward.1} parent=15 // pred_region
          %p228 = scmp.lt.s32.totalorder %s24, 1
          %s229 = scalar_select %p228, %s24, 1
          %s230 = smul.addr %s229, 32
          %s231 = smul.addr %s230, 4
          %s232 = scalar_lea.vmem %s2, %s231
        $region24: #{self_attn_forward.1} parent=15 // pred_fallthru
          _
        // Predicated region
        $region25: #{self_attn_forward.1} parent=15 // pred_check
          %p233 = pneg %p103
        $region26: #{self_attn_forward.1} parent=15 // pred_check_branch
          %235 = sbr.rel (%p233) target = $region28
        $region27: #{self_attn_forward.1} parent=15 // pred_region
          %p236 = scmp.lt.s32.totalorder %s24, 1
          %s237 = scalar_select %p236, %s24, 1
          %s238 = smul.addr %s237, 8
          %s239 = smul.addr %s238, 4
          %s240 = scalar_lea.vmem %s3, %s239
        $region28: #{self_attn_forward.1} parent=15 // pred_fallthru
          _
        // Predicated region
        $region29: #{self_attn_forward.1} parent=15 // pred_check
          %p241 = pneg %p131
        $region30: #{self_attn_forward.1} parent=15 // pred_check_branch
          %243 = sbr.rel (%p241) target = $region32
        $region31: #{self_attn_forward.1} parent=15 // pred_region
          %s244 = sand.u32 %s121, 1
          %s245 = sand.u32 %s121, 1
          %s246 = smul.addr %s245, 32
          %s247 = scalar_lea.vmem [#allocation4], %s246
          %s248 = smul.addr %s24, 8
          %s249 = sadd.s32 %s25, %s248
          %s250 = smul.addr %s249, 8
          %s251 = scalar_lea.vmem %s4, %s250
          // Predicated region
          $region33: #{self_attn_forward.1} parent=31 // pred_check
            _
          $region34: #{self_attn_forward.1} parent=31 // pred_check_branch
            %253 = sbr.rel (0) target = $region36
          $region35: #{self_attn_forward.1} parent=31 // pred_region
            // Predicated region
            $region37: #{self_attn_forward.1} parent=35 // pred_check
              _
            $region38: #{self_attn_forward.1} parent=35 // pred_check_branch
              %255 = sbr.rel (0) target = $region40
            $region39: #{self_attn_forward.1} parent=35 // pred_region
              // Predicated region
              $region52: #{self_attn_forward.1} parent=39 // pred_check
                _
              $region53: #{self_attn_forward.1} parent=39 // pred_check_branch
                %276 = sbr.rel (0) target = $region55
              $region54: #{self_attn_forward.1} parent=39 // pred_region
                loop: start=0, step=1, limit=1
                $region56: #{self_attn_forward.1} parent=54 // loop_pre_header
                  _
                $region57: #{self_attn_forward.1} parent=54 // loop_header
                  %s278 = sphi 0, %s282
                  %p279 = scmp.ge.s32.totalorder %s278, 1
                  %s283 = sphi %s251, %s251
                  %s284 = sphi %s247, %s247
                $region58: #{self_attn_forward.1} parent=54 // loop_header_branch
                  %281 = sbr.rel (%p279) target = $region62
                $region59: #{self_attn_forward.1} parent=54 // loop_body
                  %v285 = vld [vmem:[%s283] sm:$0xff]
                  %286 = vst [vmem:[%s284] sm:$0xff] %v285
                  %v287 = vld [vmem:[%s283 + $0x10] sm:$0xff]
                  %288 = vst [vmem:[%s284 + $0x8] sm:$0xff] %v287
                  %v289 = vld [vmem:[%s283 + $0x20] sm:$0xff]
                  %290 = vst [vmem:[%s284 + $0x10] sm:$0xff] %v289
                  %v291 = vld [vmem:[%s283 + $0x30] sm:$0xff]
                  %292 = vst [vmem:[%s284 + $0x18] sm:$0xff] %v291
                $region60: #{self_attn_forward.1} parent=54 // loop_footer
                  %s282 = sadd.s32 1, %s278
                $region61: #{self_attn_forward.1} parent=54 // loop_footer_branch
                  %277 = sbr.rel target = $region57
                $region62: #{self_attn_forward.1} parent=54 // loop_exit
                  _
              $region55: #{self_attn_forward.1} parent=39 // pred_fallthru
                _
              // Predicated region
              $region63: #{self_attn_forward.1} parent=39 // pred_check
                _
              $region64: #{self_attn_forward.1} parent=39 // pred_check_branch
                %294 = sbr.rel target = $region66
              $region65: #{self_attn_forward.1} parent=39 // pred_region
                _
              $region66: #{self_attn_forward.1} parent=39 // pred_fallthru
                _
            $region40: #{self_attn_forward.1} parent=35 // pred_fallthru
              _
            // Predicated region
            $region41: #{self_attn_forward.1} parent=35 // pred_check
              _
            $region42: #{self_attn_forward.1} parent=35 // pred_check_branch
              %257 = sbr.rel target = $region44
            $region43: #{self_attn_forward.1} parent=35 // pred_region
              loop: start=0, step=1, limit=1
              $region45: #{self_attn_forward.1} parent=43 // loop_pre_header
                _
              $region46: #{self_attn_forward.1} parent=43 // loop_header
                %s260 = sphi 0, %s264
                %p261 = scmp.ge.s32.totalorder %s260, 1
                %s265 = sphi %s251, %s251
                %s266 = sphi %s247, %s247
              $region47: #{self_attn_forward.1} parent=43 // loop_header_branch
                %263 = sbr.rel (%p261) target = $region51
              $region48: #{self_attn_forward.1} parent=43 // loop_body
                %v267 = vld [vmem:[%s265] sm:$0xff]
                %268 = vst [vmem:[%s266] sm:$0xff] %v267
                %v269 = vld [vmem:[%s265 + $0x10] sm:$0xff]
                %270 = vst [vmem:[%s266 + $0x8] sm:$0xff] %v269
                %v271 = vld [vmem:[%s265 + $0x20] sm:$0xff]
                %272 = vst [vmem:[%s266 + $0x10] sm:$0xff] %v271
                %v273 = vld [vmem:[%s265 + $0x30] sm:$0xff]
                %274 = vst [vmem:[%s266 + $0x18] sm:$0xff] %v273
              $region49: #{self_attn_forward.1} parent=43 // loop_footer
                %s264 = sadd.s32 1, %s260
              $region50: #{self_attn_forward.1} parent=43 // loop_footer_branch
                %259 = sbr.rel target = $region46
              $region51: #{self_attn_forward.1} parent=43 // loop_exit
                _
            $region44: #{self_attn_forward.1} parent=35 // pred_fallthru
              _
          $region36: #{self_attn_forward.1} parent=31 // pred_fallthru
            _
          %295 = vnop
        $region32: #{self_attn_forward.1} parent=15 // pred_fallthru
          _
      $region16: #{self_attn_forward.1} parent=5 // pred_fallthru
        _
      %p296 = scmp.le.s32.totalorder 1, %s17
      %p297 = scmp.lt.s32.totalorder %s17, 5
      %p298 = pnand %p296, %p297
      %p299 = pneg %p298
      // Predicated region
      $region67: #{self_attn_forward.1} parent=5 // pred_check
        _
      $region68: #{self_attn_forward.1} parent=5 // pred_check_branch
        %301 = sbr.rel (%p298) target = $region70
      $region69: #{self_attn_forward.1} parent=5 // pred_region
        %s302 = ssub.s32 %s17, 1
        %s303 = sand.u32 %s124, 1
        %s304 = sand.u32 %s124, 1
        %s305 = smul.addr %s304, 32
        %s306 = scalar_lea.vmem [#allocation4], %s305
        // Predicated region
        $region71: #{self_attn_forward.1} parent=69 // pred_check
          %p307 = pneg %p137
        $region72: #{self_attn_forward.1} parent=69 // pred_check_branch
          %309 = sbr.rel (%p307) target = $region74
        $region73: #{self_attn_forward.1} parent=69 // pred_region
          _
        $region74: #{self_attn_forward.1} parent=69 // pred_fallthru
          _
        %s310 = smul.u32 16, %s27
        %p311 = scmp.lt.s32.totalorder %s26, 1
        %s312 = scalar_select %p311, %s26, 1
        %p313 = scmp.lt.s32.totalorder %s310, 31
        %s314 = scalar_select %p313, %s310, 31
        %s315 = smul.addr %s312, 32
        %s316 = sadd.s32 %s314, %s315
        %s317 = smul.addr %s316, 4
        %s318 = scalar_lea.vmem %s1, %s317
        %p319 = pneg %p57
        %p320 = pneg %p54
        %p321 = scmp.lt.s32.totalorder %s26, 1
        %s322 = scalar_select %p321, %s26, 1
        %s323 = smul.addr %s322, 32
        %s324 = smul.addr %s323, 4
        %s325 = scalar_lea.vmem %s2, %s324
        %p326 = pneg %p83
        %p327 = pneg %p80
        %p328 = scmp.lt.s32.totalorder %s26, 1
        %s329 = scalar_select %p328, %s26, 1
        %s330 = smul.addr %s329, 8
        %s331 = smul.addr %s330, 4
        %s332 = scalar_lea.vmem %s3, %s331
        %p333 = pneg %p109
        %p334 = pneg %p106
        %s335 = sand.u32 %s124, 1
        %s336 = sand.u32 %s124, 1
        %s337 = smul.addr %s336, 32
        %s338 = scalar_lea.vmem [#allocation4], %s337
        %p339 = pneg %p137
        %p340 = pneg %p134
        %p341 = pneg %p165
        %p342 = pneg %p162
        %s343 = sand.u32 %s152, 1
        %s344 = sand.u32 %s152, 1
        %s345 = smul.addr %s344, 32
        %s346 = scalar_lea.vmem [#allocation5], %s345
        %p347 = pneg %p193
        %p348 = pneg %p190
        %s349 = sand.u32 %s180, 1
        %s350 = scalar_lea.sflag [#allocation7], %s349
        %s351 = sand.u32 %s180, 1
        %s352 = smul.addr %s351, 128
        %s353 = scalar_lea.vmem [#allocation6], %s352
        %s354 = smul.u32 16, %s27
        %p355 = scmp.lt.s32.totalorder %s26, 1
        %s356 = scalar_select %p355, %s26, 1
        %p357 = scmp.lt.s32.totalorder %s354, 31
        %s358 = scalar_select %p357, %s354, 31
        %s359 = smul.addr %s356, 32
        %s360 = sadd.s32 %s358, %s359
        %s361 = smul.addr %s360, 4
        %s362 = scalar_lea.vmem %s1, %s361
        %s363 = smul.u32 16, %s27
        %p364 = scmp.lt.s32.totalorder %s26, 1
        %s365 = scalar_select %p364, %s26, 1
        %s366 = smul.addr %s365, 32
        %s367 = smul.addr %s366, 4
        %s368 = scalar_lea.vmem %s2, %s367
        %p369 = scmp.lt.s32.totalorder %s26, 1
        %s370 = scalar_select %p369, %s26, 1
        %s371 = smul.addr %s370, 8
        %s372 = smul.addr %s371, 4
        %s373 = scalar_lea.vmem %s3, %s372
        %s374 = smul.u32 16, %s27
        %v376 = vld [vmem:[%s362] sm:$0xf]
        %v377 = vld [vmem:[%s362 + $0x4] sm:$0xf]
        %v378 = vld [vmem:[%s362 + $0x8] sm:$0xf]
        %v379 = vld [vmem:[%s362 + $0xc] sm:$0xf]
        %v380 = vld [vmem:[%s362 + $0x10] sm:$0xf]
        %v381 = vld [vmem:[%s362 + $0x14] sm:$0xf]
        %v382 = vld [vmem:[%s362 + $0x18] sm:$0xf]
        %v383 = vld [vmem:[%s362 + $0x1c] sm:$0xf]
        %v384 = vld [vmem:[%s362 + $0x20] sm:$0xf]
        %v385 = vld [vmem:[%s362 + $0x24] sm:$0xf]
        %v386 = vld [vmem:[%s362 + $0x28] sm:$0xf]
        %v387 = vld [vmem:[%s362 + $0x2c] sm:$0xf]
        %v388 = vld [vmem:[%s362 + $0x30] sm:$0xf]
        %v389 = vld [vmem:[%s362 + $0x34] sm:$0xf]
        %v390 = vld [vmem:[%s362 + $0x38] sm:$0xf]
        %v391 = vld [vmem:[%s362 + $0x3c] sm:$0xf]
        %v392 = vld [vmem:[%s368] sm:$0xff]
        %v393 = vld [vmem:[%s368 + $0x8] sm:$0xff]
        %v394 = vld [vmem:[%s368 + $0x10] sm:$0xff]
        %v395 = vld [vmem:[%s368 + $0x18] sm:$0xff]
        %v396 = vld [vmem:[%s368 + $0x20] sm:$0xff]
        %v397 = vld [vmem:[%s368 + $0x28] sm:$0xff]
        %v398 = vld [vmem:[%s368 + $0x30] sm:$0xff]
        %v399 = vld [vmem:[%s368 + $0x38] sm:$0xff]
        %v400 = vld [vmem:[%s368 + $0x40] sm:$0xff]
        %v401 = vld [vmem:[%s368 + $0x48] sm:$0xff]
        %v402 = vld [vmem:[%s368 + $0x50] sm:$0xff]
        %v403 = vld [vmem:[%s368 + $0x58] sm:$0xff]
        %v404 = vld [vmem:[%s368 + $0x60] sm:$0xff]
        %v405 = vld [vmem:[%s368 + $0x68] sm:$0xff]
        %v406 = vld [vmem:[%s368 + $0x70] sm:$0xff]
        %v407 = vld [vmem:[%s368 + $0x78] sm:$0xff]
        %v424 = vunpack.c.l.b16 %v376
        %v425 = vunpack.c.l.b16 %v377
        %v426 = vunpack.c.l.b16 %v378
        %v427 = vunpack.c.l.b16 %v379
        %v428 = vunpack.c.l.b16 %v380
        %v429 = vunpack.c.l.b16 %v381
        %v430 = vunpack.c.l.b16 %v382
        %v431 = vunpack.c.l.b16 %v383
        %v432 = vunpack.c.l.b16 %v384
        %v433 = vunpack.c.l.b16 %v385
        %v434 = vunpack.c.l.b16 %v386
        %v435 = vunpack.c.l.b16 %v387
        %v436 = vunpack.c.l.b16 %v388
        %v437 = vunpack.c.l.b16 %v389
        %v438 = vunpack.c.l.b16 %v390
        %v439 = vunpack.c.l.b16 %v391
        %v440 = vpack.c.b16 %v425, %v424
        %v441 = vpack.c.b16 %v427, %v426
        %v442 = vpack.c.b16 %v429, %v428
        %v443 = vpack.c.b16 %v431, %v430
        %v444 = vpack.c.b16 %v433, %v432
        %v445 = vpack.c.b16 %v435, %v434
        %v446 = vpack.c.b16 %v437, %v436
        %v447 = vpack.c.b16 %v439, %v438
        %v472 = vunpack.c.l.b16 %v392
        %v473 = vunpack.c.h.b16 %v392
        %v474 = vunpack.c.l.b16 %v393
        %v475 = vunpack.c.h.b16 %v393
        %v476 = vunpack.c.l.b16 %v394
        %v477 = vunpack.c.h.b16 %v394
        %v478 = vunpack.c.l.b16 %v395
        %v479 = vunpack.c.h.b16 %v395
        %v480 = vunpack.c.l.b16 %v396
        %v481 = vunpack.c.h.b16 %v396
        %v482 = vunpack.c.l.b16 %v397
        %v483 = vunpack.c.h.b16 %v397
        %v484 = vunpack.c.l.b16 %v398
        %v485 = vunpack.c.h.b16 %v398
        %v486 = vunpack.c.l.b16 %v399
        %v487 = vunpack.c.h.b16 %v399
        %v488 = vunpack.c.l.b16 %v400
        %v489 = vunpack.c.h.b16 %v400
        %v490 = vunpack.c.l.b16 %v401
        %v491 = vunpack.c.h.b16 %v401
        %v492 = vunpack.c.l.b16 %v402
        %v493 = vunpack.c.h.b16 %v402
        %v494 = vunpack.c.l.b16 %v403
        %v495 = vunpack.c.h.b16 %v403
        %v496 = vunpack.c.l.b16 %v404
        %v497 = vunpack.c.h.b16 %v404
        %v498 = vunpack.c.l.b16 %v405
        %v499 = vunpack.c.h.b16 %v405
        %v500 = vunpack.c.l.b16 %v406
        %v501 = vunpack.c.h.b16 %v406
        %v502 = vunpack.c.l.b16 %v407
        %v503 = vunpack.c.h.b16 %v407
        %v504 = vpack.c.b16 %v474, %v472
        %v505 = vpack.c.b16 %v475, %v473
        %v506 = vpack.c.b16 %v478, %v476
        %v507 = vpack.c.b16 %v479, %v477
        %v508 = vpack.c.b16 %v482, %v480
        %v509 = vpack.c.b16 %v483, %v481
        %v510 = vpack.c.b16 %v486, %v484
        %v511 = vpack.c.b16 %v487, %v485
        %v512 = vpack.c.b16 %v490, %v488
        %v513 = vpack.c.b16 %v491, %v489
        %v514 = vpack.c.b16 %v494, %v492
        %v515 = vpack.c.b16 %v495, %v493
        %v516 = vpack.c.b16 %v498, %v496
        %v517 = vpack.c.b16 %v499, %v497
        %v518 = vpack.c.b16 %v502, %v500
        %v519 = vpack.c.b16 %v503, %v501
        %536 = vmatprep.subr.bf16.mxu0 %v505
        %537 = vmatpush1.bf16.msra.mxu0 %v504
        %538 = vmatprep.subr.bf16.mxu0 %v507
        %539 = vmatpush1.bf16.msra.mxu0 %v506
        %540 = vmatprep.subr.bf16.mxu0 %v509
        %541 = vmatpush1.bf16.msra.mxu0 %v508
        %542 = vmatprep.subr.bf16.mxu0 %v511
        %543 = vmatpush1.bf16.msra.mxu0 %v510
        %544 = vmatprep.subr.bf16.mxu0 %v513
        %545 = vmatpush1.bf16.msra.mxu0 %v512
        %546 = vmatprep.subr.bf16.mxu0 %v515
        %547 = vmatpush1.bf16.msra.mxu0 %v514
        %548 = vmatprep.subr.bf16.mxu0 %v517
        %549 = vmatpush1.bf16.msra.mxu0 %v516
        %550 = vmatprep.subr.bf16.mxu0 %v519
        %551 = vmatpush1.bf16.msra.mxu0 %v518
        %552 = vmatprep.subr.bf16.mxu0 0
        %553 = vmatpush1.bf16.msra.mxu0 0
        %554 = vmatprep.subr.bf16.mxu0 0
        %555 = vmatpush1.bf16.msra.mxu0 0
        %556 = vmatprep.subr.bf16.mxu0 0
        %557 = vmatpush1.bf16.msra.mxu0 0
        %558 = vmatprep.subr.bf16.mxu0 0
        %559 = vmatpush1.bf16.msra.mxu0 0
        %560 = vmatprep.subr.bf16.mxu0 0
        %561 = vmatpush1.bf16.msra.mxu0 0
        %562 = vmatprep.subr.bf16.mxu0 0
        %563 = vmatpush1.bf16.msra.mxu0 0
        %564 = vmatprep.subr.bf16.mxu0 0
        %565 = vmatpush1.bf16.msra.mxu0 0
        %566 = vmatprep.subr.bf16.mxu0 0
        %567 = vmatpush1.bf16.msra.mxu0 0
        %568 = vmatprep.mubr.bf16.mxu0 0
        %569 = vmatmul.mubr.bf16.gmra.mrb[0].mxu0 %v440
        %v570 = vpop.f32.mrb[0].mxu0
        %v571 = vadd.f32 0.0, %v570
        %v572 = vpop.f32.mrb[0].mxu0
        %v573 = vadd.f32 0.0, %v572
        %v574 = vpop.f32.mrb[0].mxu0
        %v575 = vadd.f32 0.0, %v574
        %v576 = vpop.f32.mrb[0].mxu0
        %v577 = vadd.f32 0.0, %v576
        %578 = vmatprep.mubr.bf16.mxu0 0
        %579 = vmatmul.mubr.bf16.gmra.mrb[0].mxu0 %v441
        %v580 = vpop.f32.mrb[0].mxu0
        %v581 = vadd.f32 0.0, %v580
        %v582 = vpop.f32.mrb[0].mxu0
        %v583 = vadd.f32 0.0, %v582
        %v584 = vpop.f32.mrb[0].mxu0
        %v585 = vadd.f32 0.0, %v584
        %v586 = vpop.f32.mrb[0].mxu0
        %v587 = vadd.f32 0.0, %v586
        %588 = vmatprep.mubr.bf16.mxu0 0
        %589 = vmatmul.mubr.bf16.gmra.mrb[0].mxu0 %v442
        %v590 = vpop.f32.mrb[0].mxu0
        %v591 = vadd.f32 0.0, %v590
        %v592 = vpop.f32.mrb[0].mxu0
        %v593 = vadd.f32 0.0, %v592
        %v594 = vpop.f32.mrb[0].mxu0
        %v595 = vadd.f32 0.0, %v594
        %v596 = vpop.f32.mrb[0].mxu0
        %v597 = vadd.f32 0.0, %v596
        %598 = vmatprep.mubr.bf16.mxu0 0
        %599 = vmatmul.mubr.bf16.gmra.mrb[0].mxu0 %v443
        %v600 = vpop.f32.mrb[0].mxu0
        %v601 = vadd.f32 0.0, %v600
        %v602 = vpop.f32.mrb[0].mxu0
        %v603 = vadd.f32 0.0, %v602
        %v604 = vpop.f32.mrb[0].mxu0
        %v605 = vadd.f32 0.0, %v604
        %v606 = vpop.f32.mrb[0].mxu0
        %v607 = vadd.f32 0.0, %v606
        %608 = vmatprep.mubr.bf16.mxu0 0
        %609 = vmatmul.mubr.bf16.gmra.mrb[0].mxu0 %v444
        %v610 = vpop.f32.mrb[0].mxu0
        %v611 = vadd.f32 0.0, %v610
        %v612 = vpop.f32.mrb[0].mxu0
        %v613 = vadd.f32 0.0, %v612
        %v614 = vpop.f32.mrb[0].mxu0
        %v615 = vadd.f32 0.0, %v614
        %v616 = vpop.f32.mrb[0].mxu0
        %v617 = vadd.f32 0.0, %v616
        %618 = vmatprep.mubr.bf16.mxu0 0
        %619 = vmatmul.mubr.bf16.gmra.mrb[0].mxu0 %v445
        %v620 = vpop.f32.mrb[0].mxu0
        %v621 = vadd.f32 0.0, %v620
        %v622 = vpop.f32.mrb[0].mxu0
        %v623 = vadd.f32 0.0, %v622
        %v624 = vpop.f32.mrb[0].mxu0
        %v625 = vadd.f32 0.0, %v624
        %v626 = vpop.f32.mrb[0].mxu0
        %v627 = vadd.f32 0.0, %v626
        %628 = vmatprep.mubr.bf16.mxu0 0
        %629 = vmatmul.mubr.bf16.gmra.mrb[0].mxu0 %v446
        %v630 = vpop.f32.mrb[0].mxu0
        %v631 = vadd.f32 0.0, %v630
        %v632 = vpop.f32.mrb[0].mxu0
        %v633 = vadd.f32 0.0, %v632
        %v634 = vpop.f32.mrb[0].mxu0
        %v635 = vadd.f32 0.0, %v634
        %v636 = vpop.f32.mrb[0].mxu0
        %v637 = vadd.f32 0.0, %v636
        %638 = vmatprep.mubr.bf16.mxu0 0
        %639 = vmatmul.mubr.bf16.gmra.mrb[0].mxu0 %v447
        %v640 = vpop.f32.mrb[0].mxu0
        %v641 = vadd.f32 0.0, %v640
        %v642 = vpop.f32.mrb[0].mxu0
        %v643 = vadd.f32 0.0, %v642
        %v644 = vpop.f32.mrb[0].mxu0
        %v645 = vadd.f32 0.0, %v644
        %v646 = vpop.f32.mrb[0].mxu0
        %v647 = vadd.f32 0.0, %v646
        %648 = vdwg.mxu0
        %v649 = vmax.f32 %v571, %v573
        %650 = vmax.xlane.f32.xlu0 %v649
        %v651 = vpop.xlane.xlu0 %650
        %v652 = vmax.f32 %v575, %v577
        %653 = vmax.xlane.f32.xlu0 %v652
        %v654 = vpop.xlane.xlu0 %653
        %v655 = vmax.f32 %v581, %v583
        %656 = vmax.xlane.f32.xlu0 %v655
        %v657 = vpop.xlane.xlu0 %656
        %v658 = vmax.f32 %v585, %v587
        %659 = vmax.xlane.f32.xlu0 %v658
        %v660 = vpop.xlane.xlu0 %659
        %v661 = vmax.f32 %v591, %v593
        %662 = vmax.xlane.f32.xlu0 %v661
        %v663 = vpop.xlane.xlu0 %662
        %v664 = vmax.f32 %v595, %v597
        %665 = vmax.xlane.f32.xlu0 %v664
        %v666 = vpop.xlane.xlu0 %665
        %v667 = vmax.f32 %v601, %v603
        %668 = vmax.xlane.f32.xlu0 %v667
        %v669 = vpop.xlane.xlu0 %668
        %v670 = vmax.f32 %v605, %v607
        %671 = vmax.xlane.f32.xlu0 %v670
        %v672 = vpop.xlane.xlu0 %671
        %v673 = vmax.f32 %v611, %v613
        %674 = vmax.xlane.f32.xlu0 %v673
        %v675 = vpop.xlane.xlu0 %674
        %v676 = vmax.f32 %v615, %v617
        %677 = vmax.xlane.f32.xlu0 %v676
        %v678 = vpop.xlane.xlu0 %677
        %v679 = vmax.f32 %v621, %v623
        %680 = vmax.xlane.f32.xlu0 %v679
        %v681 = vpop.xlane.xlu0 %680
        %v682 = vmax.f32 %v625, %v627
        %683 = vmax.xlane.f32.xlu0 %v682
        %v684 = vpop.xlane.xlu0 %683
        %v685 = vmax.f32 %v631, %v633
        %686 = vmax.xlane.f32.xlu0 %v685
        %v687 = vpop.xlane.xlu0 %686
        %v688 = vmax.f32 %v635, %v637
        %689 = vmax.xlane.f32.xlu0 %v688
        %v690 = vpop.xlane.xlu0 %689
        %v691 = vmax.f32 %v641, %v643
        %692 = vmax.xlane.f32.xlu0 %v691
        %v693 = vpop.xlane.xlu0 %692
        %v694 = vmax.f32 %v645, %v647
        %695 = vmax.xlane.f32.xlu0 %v694
        %v696 = vpop.xlane.xlu0 %695
        %v697 = vsub.f32 %v571, %v651
        %v698 = vsub.f32 %v573, %v651
        %v699 = vsub.f32 %v575, %v654
        %v700 = vsub.f32 %v577, %v654
        %v701 = vsub.f32 %v581, %v657
        %v702 = vsub.f32 %v583, %v657
        %v703 = vsub.f32 %v585, %v660
        %v704 = vsub.f32 %v587, %v660
        %v705 = vsub.f32 %v591, %v663
        %v706 = vsub.f32 %v593, %v663
        %v707 = vsub.f32 %v595, %v666
        %v708 = vsub.f32 %v597, %v666
        %v709 = vsub.f32 %v601, %v669
        %v710 = vsub.f32 %v603, %v669
        %v711 = vsub.f32 %v605, %v672
        %v712 = vsub.f32 %v607, %v672
        %v713 = vsub.f32 %v611, %v675
        %v714 = vsub.f32 %v613, %v675
        %v715 = vsub.f32 %v615, %v678
        %v716 = vsub.f32 %v617, %v678
        %v717 = vsub.f32 %v621, %v681
        %v718 = vsub.f32 %v623, %v681
        %v719 = vsub.f32 %v625, %v684
        %v720 = vsub.f32 %v627, %v684
        %v721 = vsub.f32 %v631, %v687
        %v722 = vsub.f32 %v633, %v687
        %v723 = vsub.f32 %v635, %v690
        %v724 = vsub.f32 %v637, %v690
        %v725 = vsub.f32 %v641, %v693
        %v726 = vsub.f32 %v643, %v693
        %v727 = vsub.f32 %v645, %v696
        %v728 = vsub.f32 %v647, %v696
        %v729 = vmul.f32 %v697, 1.442695
        %v730 = vpow.pop %v729
        %v731 = vmul.f32 %v698, 1.442695
        %v732 = vpow.pop %v731
        %v733 = vmul.f32 %v699, 1.442695
        %v734 = vpow.pop %v733
        %v735 = vmul.f32 %v700, 1.442695
        %v736 = vpow.pop %v735
        %v737 = vmul.f32 %v701, 1.442695
        %v738 = vpow.pop %v737
        %v739 = vmul.f32 %v702, 1.442695
        %v740 = vpow.pop %v739
        %v741 = vmul.f32 %v703, 1.442695
        %v742 = vpow.pop %v741
        %v743 = vmul.f32 %v704, 1.442695
        %v744 = vpow.pop %v743
        %v745 = vmul.f32 %v705, 1.442695
        %v746 = vpow.pop %v745
        %v747 = vmul.f32 %v706, 1.442695
        %v748 = vpow.pop %v747
        %v749 = vmul.f32 %v707, 1.442695
        %v750 = vpow.pop %v749
        %v751 = vmul.f32 %v708, 1.442695
        %v752 = vpow.pop %v751
        %v753 = vmul.f32 %v709, 1.442695
        %v754 = vpow.pop %v753
        %v755 = vmul.f32 %v710, 1.442695
        %v756 = vpow.pop %v755
        %v757 = vmul.f32 %v711, 1.442695
        %v758 = vpow.pop %v757
        %v759 = vmul.f32 %v712, 1.442695
        %v760 = vpow.pop %v759
        %v761 = vmul.f32 %v713, 1.442695
        %v762 = vpow.pop %v761
        %v763 = vmul.f32 %v714, 1.442695
        %v764 = vpow.pop %v763
        %v765 = vmul.f32 %v715, 1.442695
        %v766 = vpow.pop %v765
        %v767 = vmul.f32 %v716, 1.442695
        %v768 = vpow.pop %v767
        %v769 = vmul.f32 %v717, 1.442695
        %v770 = vpow.pop %v769
        %v771 = vmul.f32 %v718, 1.442695
        %v772 = vpow.pop %v771
        %v773 = vmul.f32 %v719, 1.442695
        %v774 = vpow.pop %v773
        %v775 = vmul.f32 %v720, 1.442695
        %v776 = vpow.pop %v775
        %v777 = vmul.f32 %v721, 1.442695
        %v778 = vpow.pop %v777
        %v779 = vmul.f32 %v722, 1.442695
        %v780 = vpow.pop %v779
        %v781 = vmul.f32 %v723, 1.442695
        %v782 = vpow.pop %v781
        %v783 = vmul.f32 %v724, 1.442695
        %v784 = vpow.pop %v783
        %v785 = vmul.f32 %v725, 1.442695
        %v786 = vpow.pop %v785
        %v787 = vmul.f32 %v726, 1.442695
        %v788 = vpow.pop %v787
        %v789 = vmul.f32 %v727, 1.442695
        %v790 = vpow.pop %v789
        %v791 = vmul.f32 %v728, 1.442695
        %v792 = vpow.pop %v791
        %v793 = vadd.f32 %v730, %v732
        %794 = vadd.xlane.f32.xlu0 %v793
        %v795 = vpop.xlane.xlu0 %794
        %v796 = vadd.f32 %v734, %v736
        %797 = vadd.xlane.f32.xlu0 %v796
        %v798 = vpop.xlane.xlu0 %797
        %v799 = vadd.f32 %v738, %v740
        %800 = vadd.xlane.f32.xlu0 %v799
        %v801 = vpop.xlane.xlu0 %800
        %v802 = vadd.f32 %v742, %v744
        %803 = vadd.xlane.f32.xlu0 %v802
        %v804 = vpop.xlane.xlu0 %803
        %v805 = vadd.f32 %v746, %v748
        %806 = vadd.xlane.f32.xlu0 %v805
        %v807 = vpop.xlane.xlu0 %806
        %v808 = vadd.f32 %v750, %v752
        %809 = vadd.xlane.f32.xlu0 %v808
        %v810 = vpop.xlane.xlu0 %809
        %v811 = vadd.f32 %v754, %v756
        %812 = vadd.xlane.f32.xlu0 %v811
        %v813 = vpop.xlane.xlu0 %812
        %v814 = vadd.f32 %v758, %v760
        %815 = vadd.xlane.f32.xlu0 %v814
        %v816 = vpop.xlane.xlu0 %815
        %v817 = vadd.f32 %v762, %v764
        %818 = vadd.xlane.f32.xlu0 %v817
        %v819 = vpop.xlane.xlu0 %818
        %v820 = vadd.f32 %v766, %v768
        %821 = vadd.xlane.f32.xlu0 %v820
        %v822 = vpop.xlane.xlu0 %821
        %v823 = vadd.f32 %v770, %v772
        %824 = vadd.xlane.f32.xlu0 %v823
        %v825 = vpop.xlane.xlu0 %824
        %v826 = vadd.f32 %v774, %v776
        %827 = vadd.xlane.f32.xlu0 %v826
        %v828 = vpop.xlane.xlu0 %827
        %v829 = vadd.f32 %v778, %v780
        %830 = vadd.xlane.f32.xlu0 %v829
        %v831 = vpop.xlane.xlu0 %830
        %v832 = vadd.f32 %v782, %v784
        %833 = vadd.xlane.f32.xlu0 %v832
        %v834 = vpop.xlane.xlu0 %833
        %v835 = vadd.f32 %v786, %v788
        %836 = vadd.xlane.f32.xlu0 %v835
        %v837 = vpop.xlane.xlu0 %836
        %v838 = vadd.f32 %v790, %v792
        %839 = vadd.xlane.f32.xlu0 %v838
        %v840 = vpop.xlane.xlu0 %839
        %v841 = vrcp.pop %v795
        %v842 = vrcp.pop %v798
        %v843 = vrcp.pop %v801
        %v844 = vrcp.pop %v804
        %v845 = vrcp.pop %v807
        %v846 = vrcp.pop %v810
        %v847 = vrcp.pop %v813
        %v848 = vrcp.pop %v816
        %v849 = vrcp.pop %v819
        %v850 = vrcp.pop %v822
        %v851 = vrcp.pop %v825
        %v852 = vrcp.pop %v828
        %v853 = vrcp.pop %v831
        %v854 = vrcp.pop %v834
        %v855 = vrcp.pop %v837
        %v856 = vrcp.pop %v840
        %v857 = vmul.f32 %v730, %v841
        %v858 = vmul.f32 %v732, %v841
        %v859 = vmul.f32 %v734, %v842
        %v860 = vmul.f32 %v736, %v842
        %v861 = vmul.f32 %v738, %v843
        %v862 = vmul.f32 %v740, %v843
        %v863 = vmul.f32 %v742, %v844
        %v864 = vmul.f32 %v744, %v844
        %v865 = vmul.f32 %v746, %v845
        %v866 = vmul.f32 %v748, %v845
        %v867 = vmul.f32 %v750, %v846
        %v868 = vmul.f32 %v752, %v846
        %v869 = vmul.f32 %v754, %v847
        %v870 = vmul.f32 %v756, %v847
        %v871 = vmul.f32 %v758, %v848
        %v872 = vmul.f32 %v760, %v848
        %v873 = vmul.f32 %v762, %v849
        %v874 = vmul.f32 %v764, %v849
        %v875 = vmul.f32 %v766, %v850
        %v876 = vmul.f32 %v768, %v850
        %v877 = vmul.f32 %v770, %v851
        %v878 = vmul.f32 %v772, %v851
        %v879 = vmul.f32 %v774, %v852
        %v880 = vmul.f32 %v776, %v852
        %v881 = vmul.f32 %v778, %v853
        %v882 = vmul.f32 %v780, %v853
        %v883 = vmul.f32 %v782, %v854
        %v884 = vmul.f32 %v784, %v854
        %v885 = vmul.f32 %v786, %v855
        %v886 = vmul.f32 %v788, %v855
        %v887 = vmul.f32 %v790, %v856
        %v888 = vmul.f32 %v792, %v856
        %v889 = vpack.c.bf16 %v859, %v857
        %v890 = vpack.c.bf16 %v860, %v858
        %v891 = vpack.c.bf16 %v863, %v861
        %v892 = vpack.c.bf16 %v864, %v862
        %v893 = vpack.c.bf16 %v867, %v865
        %v894 = vpack.c.bf16 %v868, %v866
        %v895 = vpack.c.bf16 %v871, %v869
        %v896 = vpack.c.bf16 %v872, %v870
        %v897 = vpack.c.bf16 %v875, %v873
        %v898 = vpack.c.bf16 %v876, %v874
        %v899 = vpack.c.bf16 %v879, %v877
        %v900 = vpack.c.bf16 %v880, %v878
        %v901 = vpack.c.bf16 %v883, %v881
        %v902 = vpack.c.bf16 %v884, %v882
        %v903 = vpack.c.bf16 %v887, %v885
        %v904 = vpack.c.bf16 %v888, %v886
        %v905 = vld [vmem:[%s373] sm:$0xff]
        %v906 = vld [vmem:[%s373 + $0x8] sm:$0xff]
        %v907 = vld [vmem:[%s373 + $0x10] sm:$0xff]
        %v908 = vld [vmem:[%s373 + $0x18] sm:$0xff]
        %v913 = vunpack.c.l.b16 %v905
        %v914 = vunpack.c.h.b16 %v905
        %v915 = vunpack.c.l.b16 %v906
        %v916 = vunpack.c.h.b16 %v906
        %v917 = vunpack.c.l.b16 %v907
        %v918 = vunpack.c.h.b16 %v907
        %v919 = vunpack.c.l.b16 %v908
        %v920 = vunpack.c.h.b16 %v908
        %v921 = vpack.c.b16 %v915, %v913
        %v922 = vpack.c.b16 %v916, %v914
        %v923 = vpack.c.b16 %v919, %v917
        %v924 = vpack.c.b16 %v920, %v918
        %929 = vmatprep.subr.bf16.mxu0 %v890
        %930 = vmatpush1.bf16.xpose.msra.mxu0 %v889
        %931 = vmatprep.subr.bf16.mxu0 %v892
        %932 = vmatpush1.bf16.xpose.msra.mxu0 %v891
        %933 = vmatprep.subr.bf16.mxu0 %v894
        %934 = vmatpush1.bf16.xpose.msra.mxu0 %v893
        %935 = vmatprep.subr.bf16.mxu0 %v896
        %936 = vmatpush1.bf16.xpose.msra.mxu0 %v895
        %937 = vmatprep.subr.bf16.mxu0 %v898
        %938 = vmatpush1.bf16.xpose.msra.mxu0 %v897
        %939 = vmatprep.subr.bf16.mxu0 %v900
        %940 = vmatpush1.bf16.xpose.msra.mxu0 %v899
        %941 = vmatprep.subr.bf16.mxu0 %v902
        %942 = vmatpush1.bf16.xpose.msra.mxu0 %v901
        %943 = vmatprep.subr.bf16.mxu0 %v904
        %944 = vmatpush1.bf16.xpose.msra.mxu0 %v903
        %945 = vmatprep.subr.bf16.mxu0 0
        %946 = vmatpush1.bf16.xpose.msra.mxu0 0
        %947 = vmatprep.subr.bf16.mxu0 0
        %948 = vmatpush1.bf16.xpose.msra.mxu0 0
        %949 = vmatprep.subr.bf16.mxu0 0
        %950 = vmatpush1.bf16.xpose.msra.mxu0 0
        %951 = vmatprep.subr.bf16.mxu0 0
        %952 = vmatpush1.bf16.xpose.msra.mxu0 0
        %953 = vmatprep.subr.bf16.mxu0 0
        %954 = vmatpush1.bf16.xpose.msra.mxu0 0
        %955 = vmatprep.subr.bf16.mxu0 0
        %956 = vmatpush1.bf16.xpose.msra.mxu0 0
        %957 = vmatprep.subr.bf16.mxu0 0
        %958 = vmatpush1.bf16.xpose.msra.mxu0 0
        %959 = vmatprep.subr.bf16.mxu0 0
        %960 = vmatpush1.bf16.xpose.msra.mxu0 0
        %961 = vmatprep.mubr.bf16.mxu0 %v922
        %962 = vmatmul.mubr.bf16.gmra.mrb[0].mxu0 %v921
        %v963 = vpop.f32.mrb[0].mxu0
        %v964 = vadd.f32 0.0, %v963
        %v965 = vpop.f32.mrb[0].mxu0
        %v966 = vpop.f32.mrb[0].mxu0
        %v967 = vadd.f32 0.0, %v966
        %v968 = vpop.f32.mrb[0].mxu0
        %969 = vmatprep.mubr.bf16.mxu0 %v924
        %970 = vmatmul.mubr.bf16.gmra.mrb[0].mxu0 %v923
        %v971 = vpop.f32.mrb[0].mxu0
        %v972 = vadd.f32 0.0, %v971
        %v973 = vpop.f32.mrb[0].mxu0
        %v974 = vpop.f32.mrb[0].mxu0
        %v975 = vadd.f32 0.0, %v974
        %v976 = vpop.f32.mrb[0].mxu0
        %977 = vdwg.mxu0
        %s978 = sld [smem:[#allocation3]]
        %v979 = vstv %s978
        %v980 = vmul.f32 %v979, %v964
        %v981 = vmul.f32 %v979, %v967
        %v982 = vmul.f32 %v979, %v972
        %v983 = vmul.f32 %v979, %v975
        %v984 = vld [vmem:[%s306] sm:$0xff]
        %v985 = vld [vmem:[%s306 + $0x8] sm:$0xff]
        %v986 = vld [vmem:[%s306 + $0x10] sm:$0xff]
        %v987 = vld [vmem:[%s306 + $0x18] sm:$0xff]
        %v988 = vadd.f32 %v980, %v984
        %v989 = vadd.f32 %v981, %v985
        %v990 = vadd.f32 %v982, %v986
        %v991 = vadd.f32 %v983, %v987
        %992 = vst [vmem:[%s346] sm:$0xff] %v988
        %993 = vst [vmem:[%s346 + $0x8] sm:$0xff] %v989
        %994 = vst [vmem:[%s346 + $0x10] sm:$0xff] %v990
        %995 = vst [vmem:[%s346 + $0x18] sm:$0xff] %v991
        %v1012 = vunpack.c.l.b16 %v889
        %v1013 = vunpack.c.l.b16 %v890
        %v1014 = vunpack.c.h.b16 %v889
        %v1015 = vunpack.c.h.b16 %v890
        %v1016 = vunpack.c.l.b16 %v891
        %v1017 = vunpack.c.l.b16 %v892
        %v1018 = vunpack.c.h.b16 %v891
        %v1019 = vunpack.c.h.b16 %v892
        %v1020 = vunpack.c.l.b16 %v893
        %v1021 = vunpack.c.l.b16 %v894
        %v1022 = vunpack.c.h.b16 %v893
        %v1023 = vunpack.c.h.b16 %v894
        %v1024 = vunpack.c.l.b16 %v895
        %v1025 = vunpack.c.l.b16 %v896
        %v1026 = vunpack.c.h.b16 %v895
        %v1027 = vunpack.c.h.b16 %v896
        %v1028 = vunpack.c.l.b16 %v897
        %v1029 = vunpack.c.l.b16 %v898
        %v1030 = vunpack.c.h.b16 %v897
        %v1031 = vunpack.c.h.b16 %v898
        %v1032 = vunpack.c.l.b16 %v899
        %v1033 = vunpack.c.l.b16 %v900
        %v1034 = vunpack.c.h.b16 %v899
        %v1035 = vunpack.c.h.b16 %v900
        %v1036 = vunpack.c.l.b16 %v901
        %v1037 = vunpack.c.l.b16 %v902
        %v1038 = vunpack.c.h.b16 %v901
        %v1039 = vunpack.c.h.b16 %v902
        %v1040 = vunpack.c.l.b16 %v903
        %v1041 = vunpack.c.l.b16 %v904
        %v1042 = vunpack.c.h.b16 %v903
        %v1043 = vunpack.c.h.b16 %v904
        %v1044 = vpack.c.b16 %v1013, %v1012
        %v1045 = vpack.c.b16 %v1015, %v1014
        %v1046 = vpack.c.b16 %v1017, %v1016
        %v1047 = vpack.c.b16 %v1019, %v1018
        %v1048 = vpack.c.b16 %v1021, %v1020
        %v1049 = vpack.c.b16 %v1023, %v1022
        %v1050 = vpack.c.b16 %v1025, %v1024
        %v1051 = vpack.c.b16 %v1027, %v1026
        %v1052 = vpack.c.b16 %v1029, %v1028
        %v1053 = vpack.c.b16 %v1031, %v1030
        %v1054 = vpack.c.b16 %v1033, %v1032
        %v1055 = vpack.c.b16 %v1035, %v1034
        %v1056 = vpack.c.b16 %v1037, %v1036
        %v1057 = vpack.c.b16 %v1039, %v1038
        %v1058 = vpack.c.b16 %v1041, %v1040
        %v1059 = vpack.c.b16 %v1043, %v1042
        %1076 = vst [vmem:[%s353] sm:$0xff] %v1044
        %1077 = vst [vmem:[%s353 + $0x8] sm:$0xff] %v1045
        %1078 = vst [vmem:[%s353 + $0x10] sm:$0xff] %v1046
        %1079 = vst [vmem:[%s353 + $0x18] sm:$0xff] %v1047
        %1080 = vst [vmem:[%s353 + $0x20] sm:$0xff] %v1048
        %1081 = vst [vmem:[%s353 + $0x28] sm:$0xff] %v1049
        %1082 = vst [vmem:[%s353 + $0x30] sm:$0xff] %v1050
        %1083 = vst [vmem:[%s353 + $0x38] sm:$0xff] %v1051
        %1084 = vst [vmem:[%s353 + $0x40] sm:$0xff] %v1052
        %1085 = vst [vmem:[%s353 + $0x48] sm:$0xff] %v1053
        %1086 = vst [vmem:[%s353 + $0x50] sm:$0xff] %v1054
        %1087 = vst [vmem:[%s353 + $0x58] sm:$0xff] %v1055
        %1088 = vst [vmem:[%s353 + $0x60] sm:$0xff] %v1056
        %1089 = vst [vmem:[%s353 + $0x68] sm:$0xff] %v1057
        %1090 = vst [vmem:[%s353 + $0x70] sm:$0xff] %v1058
        %1091 = vst [vmem:[%s353 + $0x78] sm:$0xff] %v1059
        %s1092 = sand.u32 %s152, 1
        %s1093 = sand.u32 %s152, 1
        %s1094 = smul.addr %s1093, 32
        %s1095 = scalar_lea.vmem [#allocation5], %s1094
        %s1096 = sand.u32 %s180, 1
        %s1097 = scalar_lea.sflag [#allocation7], %s1096
        %s1098 = sand.u32 %s180, 1
        %s1099 = smul.addr %s1098, 128
        %s1100 = scalar_lea.vmem [#allocation6], %s1099
        // Predicated region
        $region75: #{self_attn_forward.1} parent=69 // pred_check
          %p1101 = pneg %p162
        $region76: #{self_attn_forward.1} parent=69 // pred_check_branch
          %1103 = sbr.rel (%p1101) target = $region78
        $region77: #{self_attn_forward.1} parent=69 // pred_region
          %s1104 = smul.addr %s26, 8
          %s1105 = sadd.s32 %s27, %s1104
          %s1106 = smul.addr %s1105, 8
          %s1107 = scalar_lea.vmem %s5, %s1106
          // Predicated region
          $region79: #{self_attn_forward.1} parent=77 // pred_check
            _
          $region80: #{self_attn_forward.1} parent=77 // pred_check_branch
            %1109 = sbr.rel (0) target = $region82
          $region81: #{self_attn_forward.1} parent=77 // pred_region
            // Predicated region
            $region83: #{self_attn_forward.1} parent=81 // pred_check
              _
            $region84: #{self_attn_forward.1} parent=81 // pred_check_branch
              %1111 = sbr.rel (0) target = $region86
            $region85: #{self_attn_forward.1} parent=81 // pred_region
              // Predicated region
              $region98: #{self_attn_forward.1} parent=85 // pred_check
                _
              $region99: #{self_attn_forward.1} parent=85 // pred_check_branch
                %1132 = sbr.rel (0) target = $region101
              $region100: #{self_attn_forward.1} parent=85 // pred_region
                loop: start=0, step=1, limit=1
                $region102: #{self_attn_forward.1} parent=100 // loop_pre_header
                  _
                $region103: #{self_attn_forward.1} parent=100 // loop_header
                  %s1134 = sphi 0, %s1138
                  %p1135 = scmp.ge.s32.totalorder %s1134, 1
                  %s1139 = sphi %s1095, %s1095
                  %s1140 = sphi %s1107, %s1107
                $region104: #{self_attn_forward.1} parent=100 // loop_header_branch
                  %1137 = sbr.rel (%p1135) target = $region108
                $region105: #{self_attn_forward.1} parent=100 // loop_body
                  %v1141 = vld [vmem:[%s1139] sm:$0xff]
                  %1142 = vst [vmem:[%s1140] sm:$0xff] %v1141
                  %v1143 = vld [vmem:[%s1139 + $0x8] sm:$0xff]
                  %1144 = vst [vmem:[%s1140 + $0x10] sm:$0xff] %v1143
                  %v1145 = vld [vmem:[%s1139 + $0x10] sm:$0xff]
                  %1146 = vst [vmem:[%s1140 + $0x20] sm:$0xff] %v1145
                  %v1147 = vld [vmem:[%s1139 + $0x18] sm:$0xff]
                  %1148 = vst [vmem:[%s1140 + $0x30] sm:$0xff] %v1147
                $region106: #{self_attn_forward.1} parent=100 // loop_footer
                  %s1138 = sadd.s32 1, %s1134
                $region107: #{self_attn_forward.1} parent=100 // loop_footer_branch
                  %1133 = sbr.rel target = $region103
                $region108: #{self_attn_forward.1} parent=100 // loop_exit
                  _
              $region101: #{self_attn_forward.1} parent=85 // pred_fallthru
                _
              // Predicated region
              $region109: #{self_attn_forward.1} parent=85 // pred_check
                _
              $region110: #{self_attn_forward.1} parent=85 // pred_check_branch
                %1150 = sbr.rel target = $region112
              $region111: #{self_attn_forward.1} parent=85 // pred_region
                _
              $region112: #{self_attn_forward.1} parent=85 // pred_fallthru
                _
            $region86: #{self_attn_forward.1} parent=81 // pred_fallthru
              _
            // Predicated region
            $region87: #{self_attn_forward.1} parent=81 // pred_check
              _
            $region88: #{self_attn_forward.1} parent=81 // pred_check_branch
              %1113 = sbr.rel target = $region90
            $region89: #{self_attn_forward.1} parent=81 // pred_region
              loop: start=0, step=1, limit=1
              $region91: #{self_attn_forward.1} parent=89 // loop_pre_header
                _
              $region92: #{self_attn_forward.1} parent=89 // loop_header
                %s1116 = sphi 0, %s1120
                %p1117 = scmp.ge.s32.totalorder %s1116, 1
                %s1121 = sphi %s1095, %s1095
                %s1122 = sphi %s1107, %s1107
              $region93: #{self_attn_forward.1} parent=89 // loop_header_branch
                %1119 = sbr.rel (%p1117) target = $region97
              $region94: #{self_attn_forward.1} parent=89 // loop_body
                %v1123 = vld [vmem:[%s1121] sm:$0xff]
                %1124 = vst [vmem:[%s1122] sm:$0xff] %v1123
                %v1125 = vld [vmem:[%s1121 + $0x8] sm:$0xff]
                %1126 = vst [vmem:[%s1122 + $0x10] sm:$0xff] %v1125
                %v1127 = vld [vmem:[%s1121 + $0x10] sm:$0xff]
                %1128 = vst [vmem:[%s1122 + $0x20] sm:$0xff] %v1127
                %v1129 = vld [vmem:[%s1121 + $0x18] sm:$0xff]
                %1130 = vst [vmem:[%s1122 + $0x30] sm:$0xff] %v1129
              $region95: #{self_attn_forward.1} parent=89 // loop_footer
                %s1120 = sadd.s32 1, %s1116
              $region96: #{self_attn_forward.1} parent=89 // loop_footer_branch
                %1115 = sbr.rel target = $region92
              $region97: #{self_attn_forward.1} parent=89 // loop_exit
                _
            $region90: #{self_attn_forward.1} parent=81 // pred_fallthru
              _
          $region82: #{self_attn_forward.1} parent=77 // pred_fallthru
            _
          %1151 = vnop
        $region78: #{self_attn_forward.1} parent=69 // pred_fallthru
          _
        // Predicated region
        $region113: #{self_attn_forward.1} parent=69 // pred_check
          %p1152 = pneg %p190
        $region114: #{self_attn_forward.1} parent=69 // pred_check_branch
          %1154 = sbr.rel (%p1152) target = $region116
        $region115: #{self_attn_forward.1} parent=69 // pred_region
          %s1155 = smul.u32 16, %s27
          %s1157 = ssub.s32 2048, 2048
          %1158 = vsyncadd %s1097, %s1157
          %s1159 = smul.addr %s1155, 2
          %s1160 = smul.addr %s26, 64
          %s1161 = sadd.s32 %s1159, %s1160
          %s1162 = smul.addr %s1161, 64
          %s1163 = scalar_lea.hbm %s6, %s1162
          %s1164 = sshll.u32 %s1100, 4
          %s1165 = int_to_ptr.vmem [resolvable:$true] %s1164
          %1170 = dma.vmem_to_hbm [thread:$0]  %s1165, 2048, %s1163, %s1097, 128, 128, 8
        $region116: #{self_attn_forward.1} parent=69 // pred_fallthru
          _
      $region70: #{self_attn_forward.1} parent=5 // pred_fallthru
        _
      %p1171 = scmp.le.s32.totalorder 2, %s17
      // Predicated region
      $region117: #{self_attn_forward.1} parent=5 // pred_check
        %p1172 = pneg %p1171
      $region118: #{self_attn_forward.1} parent=5 // pred_check_branch
        %1174 = sbr.rel (%p1172) target = $region120
      $region119: #{self_attn_forward.1} parent=5 // pred_region
        %s1175 = ssub.s32 %s17, 2
        // Predicated region
        $region121: #{self_attn_forward.1} parent=119 // pred_check
          %p1176 = pneg %p168
        $region122: #{self_attn_forward.1} parent=119 // pred_check_branch
          %1178 = sbr.rel (%p1176) target = $region124
        $region123: #{self_attn_forward.1} parent=119 // pred_region
          %s1179 = sand.u32 %s153, 1
          %s1180 = sand.u32 %s153, 1
          %s1181 = smul.addr %s1180, 32
          %s1182 = scalar_lea.vmem [#allocation5], %s1181
        $region124: #{self_attn_forward.1} parent=119 // pred_fallthru
          _
        // Predicated region
        $region125: #{self_attn_forward.1} parent=119 // pred_check
          %p1183 = pneg %p196
        $region126: #{self_attn_forward.1} parent=119 // pred_check_branch
          %1185 = sbr.rel (%p1183) target = $region128
        $region127: #{self_attn_forward.1} parent=119 // pred_region
          %s1186 = sand.u32 %s181, 1
          %s1187 = scalar_lea.sflag [#allocation7], %s1186
          %s1188 = sand.u32 %s181, 1
          %s1189 = smul.addr %s1188, 128
          %s1190 = scalar_lea.vmem [#allocation6], %s1189
          %1191 = dma.done %s1187, 2048
        $region128: #{self_attn_forward.1} parent=119 // pred_fallthru
          _
      $region120: #{self_attn_forward.1} parent=5 // pred_fallthru
        _
    $region6: #{self_attn_forward.1} parent=1 // loop_footer
      %s21 = sadd.s32 1, %s17
    $region7: #{self_attn_forward.1} parent=1 // loop_footer_branch
      %16 = sbr.rel target = $region3
    $region8: #{self_attn_forward.1} parent=1 // loop_exit
      _
    %1192 = vsyncpa [#allocation7], 1
    %s1193 = scalar_lea.sflag [#allocation7], 1
    %1194 = vsyncpa %s1193, 1

</llo_original>
